<compile_context>
chip_gen: v7x
topology: tpu7x:2x2x1
jax: 0.10.0
libtpu: 0.0.40
codegen_flags: <defaults>
</compile_context>

<pallas_src>
import functools

import jax
import jax.numpy as jnp
import numpy as np
from jax import lax
from jax.experimental import pallas as pl
from jax.experimental.pallas import tpu as pltpu

EPS = 1e-5


# ---------------------------------------------------------------------------
# Fused kernel: (input affine) -> Chebyshev(K=3) -> Linear -> bias -> ReLU,
# plus merged per-tile BatchNorm partial statistics.
# ---------------------------------------------------------------------------
def _fused_gcn_kernel(s_ref, x_ref, asc_ref, ash_ref, w_ref, b_ref,
                      y_ref, stat_ref, *, bt, c_in, c_out, n_real, mxu_dtype):
    np_pad = x_ref.shape[0]

    # Previous layer's BatchNorm folded in as a per-column affine (identity on
    # the first layer / when batch_norm=False).  Elementwise math stays f32.
    x0 = x_ref[...] * asc_ref[...] + ash_ref[...]              # (Np, bt*c_in)

    # Both Chebyshev terms in ONE MXU push against the stacked [S ; 2*S@S]
    # operand (no serial x1 -> x2 chain).  x2's "- x0" is folded into W0'.
    x0m = x0.astype(mxu_dtype)
    xz = jnp.dot(s_ref[...], x0m, preferred_element_type=jnp.float32)
    x1m = xz[:np_pad].astype(mxu_dtype)                        # S @ x0
    x2m = xz[np_pad:].astype(mxu_dtype)                        # 2*S@S @ x0

    w = w_ref[...]                  # (3*c_in, c_out) = [(W0-W2)^T ; W1^T ; W2^T]
    bias = b_ref[...]               # (1, c_out)

    # Per-batch weight contraction (NO block-diagonal weight expansion): one
    # (Np, 3*c_in) x (3*c_in, c_out) matmul per batch element in the tile.
    y_blocks = []
    for b in range(bt):             # static, fully unrolled; static lane slices
        lo = b * c_in
        xcat = jnp.concatenate(
            [x0m[:, lo:lo + c_in], x1m[:, lo:lo + c_in], x2m[:, lo:lo + c_in]],
            axis=1)
        yb = jnp.dot(xcat, w, preferred_element_type=jnp.float32) + bias
        y_blocks.append(jnp.maximum(yb, 0.0))                  # bias + ReLU
    y = y_blocks[0] if bt == 1 else jnp.concatenate(y_blocks, axis=1)

    if n_real != np_pad:
        # Zero the padded node rows so BN statistics stay exact.
        row_mask = (lax.broadcasted_iota(jnp.int32, (np_pad, 1), 0)
                    < n_real).astype(jnp.float32)
        y = y * row_mask

    y_ref[...] = y                  # single lane-dense full-width store

    # Merged (sum, sum^2) side output; the cross-tile reduction happens outside
    # so the grid axis stays "parallel".
    ssum = jnp.sum(y, axis=0, keepdims=True)
    ssq = jnp.sum(y * y, axis=0, keepdims=True)
    stat_ref[...] = jnp.concatenate([ssum, ssq], axis=0)[None]


# ---------------------------------------------------------------------------
# Tiling / VMEM helpers
# ---------------------------------------------------------------------------
def _vmem_capacity():
    try:
        return int(pltpu.get_tpu_info().vmem_capacity_bytes)
    except Exception:
        return 64 * 1024 * 1024        # conservative (v7x) fallback


def _working_set_bytes(np_pad, c_in, c_out, bt, mxu_bytes):
    """Conservative: assumes Pallas double-buffers EVERY operand (we do not
    rely on pl.Buffered(1) for the constant-index_map operands)."""
    m_in, m_out = bt * c_in, bt * c_out
    db = 2
    return (db * 2 * np_pad * np_pad * mxu_bytes       # stacked [S ; 2*S@S]
            + db * 3 * c_in * c_out * mxu_bytes        # packed weights
            + db * np_pad * m_in * 4                   # x tile stream
            + db * np_pad * m_out * 4                  # y tile stream
            + db * 2 * m_out * 4                       # BN stat tile
            + 3 * np_pad * m_in * 4                    # x0 + [x1; 2S^2 x0] f32
            + 3 * np_pad * m_in * mxu_bytes            # mxu-dtype casts
            + np_pad * m_out * 4)                      # y value before store


def _vmem_limit(need_bytes):
    cap = _vmem_capacity()
    return int(min(max(2 * need_bytes, 16 * 1024 * 1024), int(0.9 * cap)))


def _pick_batch_tile(batch, c_in, c_out, np_pad, mxu_bytes):
    """Largest batch tile whose working set fits ~0.65 of this chip's VMEM,
    preferring an even grid-step count (v7x: 2 TensorCores per chip)."""
    budget = int(0.65 * _vmem_capacity())

    def fits(bt):
        return _working_set_bytes(np_pad, c_in, c_out, bt, mxu_bytes) <= budget

    if fits(batch):
        return batch                              # single tile, grid = (1,)

    # Candidate tiles: divisors of batch whose lane widths stay 128-aligned so
    # tiled blocks satisfy TPU layout rules.
    cands = [bt for bt in range(batch - 1, 0, -1)
             if batch % bt == 0
             and (bt * c_in) % 128 == 0 and (bt * c_out) % 128 == 0]
    fitting = [bt for bt in cands if fits(bt)]
    if fitting:
        best = fitting[0]
        for bt in fitting:                        # prefer even #grid-steps
            if (batch // bt) % 2 == 0 and bt * 2 >= best:
                return bt
        return best
    if cands:
        return cands[-1]    # smallest aligned tile; rely on vmem_limit headroom
    # TODO(synk): pad the batch (lane axis) to a 128-aligned split instead of
    # falling back to a full-width tile.
    return batch


# ---------------------------------------------------------------------------
# One fused GCN(K=3) + bias + ReLU layer on the (N, B*C) column layout.
# ---------------------------------------------------------------------------
def _gcn_relu_layer(x_cols, s_stack, w_cat, bias, in_scale, in_shift,
                    batch, c_in, c_out, n_real, mxu_dtype):
    """Returns y_cols (Np, B*c_out) and per-channel (sum, sum_sq) over B*N."""
    np_pad = x_cols.shape[0]
    mxu_bytes = np.dtype(mxu_dtype).itemsize
    bt = _pick_batch_tile(batch, c_in, c_out, np_pad, mxu_bytes)
    t = batch // bt
    m_in, m_out = bt * c_in, bt * c_out

    asc = jnp.tile(in_scale.astype(jnp.float32), bt)[None, :]    # (1, m_in)
    ash = jnp.tile(in_shift.astype(jnp.float32), bt)[None, :]    # (1, m_in)
    b_row = bias.astype(jnp.float32)[None, :]                    # (1, c_out)

    flops = (2 * (2 * np_pad) * np_pad * batch * c_in            # [S;2S^2] @ x0
             + batch * 2 * np_pad * (3 * c_in) * c_out)          # weight matmuls
    bytes_accessed = (2 * np_pad * np_pad * mxu_bytes
                      + 3 * c_in * c_out * mxu_bytes
                      + np_pad * batch * (c_in + c_out) * 4
                      + (2 * m_in + c_out + t * 2 * m_out) * 4)
    need = _working_set_bytes(np_pad, c_in, c_out, bt, mxu_bytes)

    kernel = functools.partial(_fused_gcn_kernel, bt=bt, c_in=c_in,
                               c_out=c_out, n_real=n_real, mxu_dtype=mxu_dtype)
    y, stats = pl.pallas_call(
        kernel,
        grid=(t,),
        in_specs=[
            pl.BlockSpec((2 * np_pad, np_pad), lambda i: (0, 0)),  # [S; 2S^2]
            pl.BlockSpec((np_pad, m_in), lambda i: (0, i)),        # x tile
            pl.BlockSpec((1, m_in), lambda i: (0, 0)),             # BN scale
            pl.BlockSpec((1, m_in), lambda i: (0, 0)),             # BN shift
            pl.BlockSpec((3 * c_in, c_out), lambda i: (0, 0)),     # weights
            pl.BlockSpec((1, c_out), lambda i: (0, 0)),            # bias
        ],
        out_specs=(
            pl.BlockSpec((np_pad, m_out), lambda i: (0, i)),       # y tile
            pl.BlockSpec((1, 2, m_out), lambda i: (i, 0, 0)),      # (sum, sumsq)
        ),
        out_shape=(
            jax.ShapeDtypeStruct((np_pad, batch * c_out), jnp.float32),
            jax.ShapeDtypeStruct((t, 2, m_out), jnp.float32),
        ),
        compiler_params=pltpu.CompilerParams(
            dimension_semantics=("parallel",),
            vmem_limit_bytes=_vmem_limit(need)),
        cost_estimate=pl.CostEstimate(
            flops=flops, transcendentals=0, bytes_accessed=bytes_accessed),
    )(s_stack, x_cols, asc, ash, w_cat, b_row)

    ch = stats.reshape(t, 2, bt, c_out).sum(axis=(0, 2))          # (2, c_out)
    return y, ch[0], ch[1]


def _bn_affine(ch_sum, ch_sq, count, gamma, beta):
    """BatchNorm1d training-mode stats -> per-channel (scale, shift), f32."""
    mean = ch_sum / count
    var = ch_sq / count - mean * mean       # biased variance (torch training)
    scale = gamma.astype(jnp.float32) / jnp.sqrt(var + EPS)
    shift = beta.astype(jnp.float32) - mean * scale
    return scale, shift


# ---------------------------------------------------------------------------
# UNetConvBlock forward: GCN -> ReLU -> [BN] -> GCN -> ReLU -> [BN]
# ---------------------------------------------------------------------------
def unet_conv_block(x, support, params, batch_norm=True, mxu_dtype=jnp.float32):
    """x: (B, C_in, N); support: (N, N); params: [(W, b, gamma, beta), ...]
    with W of shape (C_out, C_in * 3).  Returns (B, C_out, N)."""
    batch, c_in, n = x.shape
    sub = 16 if np.dtype(mxu_dtype) == np.dtype(jnp.bfloat16) else 8
    np_pad = -(-n // sub) * sub     # TODO(synk): prefer 128/256 for big graphs

    # Stacked support [S ; 2*S@S]: both Chebyshev terms from one matmul.
    # (Per-support prep; could be hoisted out of the jit entirely.)
    s = support.astype(jnp.float32)
    if np_pad != n:
        s = jnp.zeros((np_pad, np_pad), jnp.float32).at[:n, :n].set(s)
    s2 = 2.0 * jnp.dot(s, s, precision=lax.Precision.HIGHEST)
    s_stack = jnp.concatenate([s, s2], axis=0).astype(mxu_dtype)   # (2Np, Np)

    # (B, C, N) -> (Np, B*C): node-major, batch-major/channel-minor lanes.
    x_cols = jnp.transpose(x, (2, 0, 1)).reshape(n, batch * c_in)
    x_cols = x_cols.astype(jnp.float32)
    if np_pad != n:
        x_cols = jnp.zeros((np_pad, batch * c_in), jnp.float32).at[:n].set(x_cols)

    scale = jnp.ones((c_in,), jnp.float32)
    shift = jnp.zeros((c_in,), jnp.float32)
    c_prev = c_in
    for (w, b, gamma, beta) in params:
        c_out = w.shape[0]
        # Tiny per-layer weight packing (Chebyshev fold W0' = W0 - W2); the
        # bt^2 block-diagonal expansion of the previous version is gone.
        w0, w1, w2 = (w[:, k::3].astype(jnp.float32) for k in range(3))
        w_cat = jnp.concatenate([(w0 - w2).T, w1.T, w2.T],
                                axis=0).astype(mxu_dtype)       # (3*c_in, c_out)
        x_cols, ch_sum, ch_sq = _gcn_relu_layer(
            x_cols, s_stack, w_cat, b, scale, shift,
            batch, c_prev, c_out, n, mxu_dtype)
        if batch_norm:
            scale, shift = _bn_affine(ch_sum, ch_sq, batch * n, gamma, beta)
        else:
            scale = jnp.ones((c_out,), jnp.float32)
            shift = jnp.zeros((c_out,), jnp.float32)
        c_prev = c_out

    # Final (deferred) BN affine + layout back to the module's (B, C_out, N).
    y = x_cols[:n].reshape(n, batch, c_prev) * scale + shift
    return jnp.transpose(y, (1, 2, 0))


# ---------------------------------------------------------------------------
# Pure-JAX reference (mirrors the PyTorch code) for validation
# ---------------------------------------------------------------------------
def _ref_dot(a, b, mxu_dtype):
    return jnp.dot(a.astype(mxu_dtype), b.astype(mxu_dtype),
                   preferred_element_type=jnp.float32,
                   precision=lax.Precision.HIGHEST)


def ref_block(x, support, params, batch_norm=True, mxu_dtype=jnp.float32):
    batch, _, n = x.shape
    for (w, b, gamma, beta) in params:
        c_in = x.shape[1]
        c_out = w.shape[0]
        x0 = jnp.transpose(x, (2, 1, 0)).reshape(n, -1)
        x1 = _ref_dot(support, x0, mxu_dtype)
        x2 = 2.0 * _ref_dot(support, x1, mxu_dtype) - x0
        xs = jnp.stack([x0, x1, x2], 0).reshape(3, n, c_in, batch)
        xs = jnp.transpose(xs, (3, 1, 2, 0)).reshape(batch * n, c_in * 3)
        y = _ref_dot(xs, w.T, mxu_dtype) + b
        y = jnp.transpose(y.reshape(batch, n, c_out), (0, 2, 1))
        y = jnp.maximum(y, 0.0)
        if batch_norm:
            mean = y.mean(axis=(0, 2), keepdims=True)
            var = ((y - mean) ** 2).mean(axis=(0, 2), keepdims=True)
            y = (y - mean) / jnp.sqrt(var + EPS)
            y = y * gamma[None, :, None] + beta[None, :, None]
        x = y
    return x


if __name__ == "__main__":
    # Small shapes consistent with the module: (batch, in_size, num_nodes).
    B, IN_SIZE, OUT_SIZE, N = 2, 4, 8, 16
    K = 3                                   # UNetConvBlock uses kernel_size=3

    key = jax.random.PRNGKey(0)
    k_x, k_s, k_w1, k_b1, k_w2, k_b2 = jax.random.split(key, 6)

    x = jax.random.normal(k_x, (B, IN_SIZE, N), dtype=jnp.float32)
    support = jax.random.normal(k_s, (N, N), dtype=jnp.float32) * 0.1

    w1 = jax.random.normal(k_w1, (OUT_SIZE, IN_SIZE * K), jnp.float32) * 0.1
    b1 = jax.random.normal(k_b1, (OUT_SIZE,), jnp.float32) * 0.1
    w2 = jax.random.normal(k_w2, (OUT_SIZE, OUT_SIZE * K), jnp.float32) * 0.1
    b2 = jax.random.normal(k_b2, (OUT_SIZE,), jnp.float32) * 0.1
    g1 = jnp.ones((OUT_SIZE,), jnp.float32)
    be1 = jnp.zeros((OUT_SIZE,), jnp.float32)
    g2 = jnp.ones((OUT_SIZE,), jnp.float32)
    be2 = jnp.zeros((OUT_SIZE,), jnp.float32)
    params = [(w1, b1, g1, be1), (w2, b2, g2, be2)]

    # f32 MXU path with training-mode BatchNorm (tolerance absorbs MXU f32
    # emulation / reassociation differences; real layout/BN bugs are O(1)).
    fwd_f32 = jax.jit(functools.partial(unet_conv_block, batch_norm=True,
                                        mxu_dtype=jnp.float32))
    out = jax.block_until_ready(fwd_f32(x, support, params))
    ref = ref_block(x, support, params, batch_norm=True, mxu_dtype=jnp.float32)
    assert out.shape == (B, OUT_SIZE, N), out.shape
    err = float(jnp.max(jnp.abs(out - ref)))
    assert err < 2e-2, err

    # bf16 MXU-operand fast path (recommended on all generations incl. v5e:
    # halves resident support/weight VMEM, ~2x matmul rate; elementwise math
    # stays f32).  batch_norm=False is the DCRNN_Single default.
    fwd_bf16 = jax.jit(functools.partial(unet_conv_block, batch_norm=False,
                                         mxu_dtype=jnp.bfloat16))
    out_bf16 = jax.block_until_ready(fwd_bf16(x, support, params))
    ref_bf16 = ref_block(x, support, params, batch_norm=False,
                         mxu_dtype=jnp.bfloat16)
    assert out_bf16.shape == (B, OUT_SIZE, N), out_bf16.shape
    err_bf16 = float(jnp.max(jnp.abs(out_bf16 - ref_bf16)))
    assert err_bf16 < 3e-2, err_bf16

    print("KERNEL_OK")
</pallas_src>

<mosaic_0001>
module attributes {stable_mosaic.version = 11 : i64} {
  func.func @_fused_gcn_kernel(%arg0: i32, %arg1: memref<32x16xf32, #tpu.memory_space<vmem>>, %arg2: memref<16x8xf32, #tpu.memory_space<vmem>>, %arg3: memref<1x8xf32, #tpu.memory_space<vmem>>, %arg4: memref<1x8xf32, #tpu.memory_space<vmem>>, %arg5: memref<12x8xf32, #tpu.memory_space<vmem>>, %arg6: memref<1x8xf32, #tpu.memory_space<vmem>>, %arg7: memref<16x16xf32, #tpu.memory_space<vmem>>, %arg8: memref<1x2x16xf32, #tpu.memory_space<vmem>>) attributes {dimension_semantics = [#tpu.dimension_semantics<parallel>], iteration_bounds = array<i64: 1>, scalar_prefetch = 0 : i64, scratch_operands = 0 : i64, tpu.core_type = #tpu.core_type<tc>, window_params = [{pipeline_mode = #tpu.pipeline_mode<synchronous>, transform_indices = @transform_0, window_bounds = array<i64: 32, 16>}, {transform_indices = @transform_1, window_bounds = array<i64: 16, 8>}, {pipeline_mode = #tpu.pipeline_mode<synchronous>, transform_indices = @transform_2, window_bounds = array<i64: 1, 8>}, {pipeline_mode = #tpu.pipeline_mode<synchronous>, transform_indices = @transform_3, window_bounds = array<i64: 1, 8>}, {pipeline_mode = #tpu.pipeline_mode<synchronous>, transform_indices = @transform_4, window_bounds = array<i64: 12, 8>}, {pipeline_mode = #tpu.pipeline_mode<synchronous>, transform_indices = @transform_5, window_bounds = array<i64: 1, 8>}, {transform_indices = @transform_6, window_bounds = array<i64: 16, 16>}, {transform_indices = @transform_7, window_bounds = array<i64: 1, 2, 16>}]} {
    %c0 = arith.constant 0 : index
    %c0_0 = arith.constant 0 : index
    %0 = vector.load %arg2[%c0, %c0_0] : memref<16x8xf32, #tpu.memory_space<vmem>>, vector<16x8xf32>
    %c0_1 = arith.constant 0 : index
    %c0_2 = arith.constant 0 : index
    %1 = vector.load %arg3[%c0_1, %c0_2] : memref<1x8xf32, #tpu.memory_space<vmem>>, vector<1x8xf32>
    %2 = vector.broadcast %1 : vector<1x8xf32> to vector<16x8xf32>
    %3 = arith.mulf %0, %2 : vector<16x8xf32>
    %c0_3 = arith.constant 0 : index
    %c0_4 = arith.constant 0 : index
    %4 = vector.load %arg4[%c0_3, %c0_4] : memref<1x8xf32, #tpu.memory_space<vmem>>, vector<1x8xf32>
    %5 = vector.broadcast %4 : vector<1x8xf32> to vector<16x8xf32>
    %6 = arith.addf %3, %5 : vector<16x8xf32>
    %c0_5 = arith.constant 0 : index
    %c0_6 = arith.constant 0 : index
    %7 = vector.load %arg1[%c0_5, %c0_6] : memref<32x16xf32, #tpu.memory_space<vmem>>, vector<32x16xf32>
    %cst = arith.constant dense<0.000000e+00> : vector<32x8xf32>
    %8 = tpu.matmul %7, %6, %cst {dimension_numbers = #tpu.dot_dimension_numbers<[1], [0], [0], [1], [0, 0, 1, 1], [], []>} : vector<32x16xf32>, vector<16x8xf32>, vector<32x8xf32> -> vector<32x8xf32>
    %9 = vector.extract_strided_slice %8 {offsets = [0, 0], sizes = [16, 8], strides = [1, 1]} : vector<32x8xf32> to vector<16x8xf32>
    %10 = vector.extract_strided_slice %8 {offsets = [16, 0], sizes = [16, 8], strides = [1, 1]} : vector<32x8xf32> to vector<16x8xf32>
    %c0_7 = arith.constant 0 : index
    %c0_8 = arith.constant 0 : index
    %11 = vector.load %arg5[%c0_7, %c0_8] : memref<12x8xf32, #tpu.memory_space<vmem>>, vector<12x8xf32>
    %c0_9 = arith.constant 0 : index
    %c0_10 = arith.constant 0 : index
    %12 = vector.load %arg6[%c0_9, %c0_10] : memref<1x8xf32, #tpu.memory_space<vmem>>, vector<1x8xf32>
    %13 = vector.extract_strided_slice %6 {offsets = [0, 0], sizes = [16, 4], strides = [1, 1]} : vector<16x8xf32> to vector<16x4xf32>
    %14 = vector.extract_strided_slice %9 {offsets = [0, 0], sizes = [16, 4], strides = [1, 1]} : vector<16x8xf32> to vector<16x4xf32>
    %15 = vector.extract_strided_slice %10 {offsets = [0, 0], sizes = [16, 4], strides = [1, 1]} : vector<16x8xf32> to vector<16x4xf32>
    %16 = tpu.concatenate %13, %14, %15 in 1 : vector<16x4xf32>, vector<16x4xf32>, vector<16x4xf32> -> vector<16x12xf32>
    %cst_11 = arith.constant dense<0.000000e+00> : vector<16x8xf32>
    %17 = tpu.matmul %16, %11, %cst_11 {dimension_numbers = #tpu.dot_dimension_numbers<[1], [0], [0], [1], [0, 0, 1, 1], [], []>} : vector<16x12xf32>, vector<12x8xf32>, vector<16x8xf32> -> vector<16x8xf32>
    %18 = vector.broadcast %12 : vector<1x8xf32> to vector<16x8xf32>
    %19 = arith.addf %17, %18 : vector<16x8xf32>
    %cst_12 = arith.constant 0.000000e+00 : f32
    %20 = vector.broadcast %cst_12 : f32 to vector<16x8xf32>
    %21 = arith.maximumf %19, %20 : vector<16x8xf32>
    %22 = vector.extract_strided_slice %6 {offsets = [0, 4], sizes = [16, 4], strides = [1, 1]} : vector<16x8xf32> to vector<16x4xf32>
    %23 = vector.extract_strided_slice %9 {offsets = [0, 4], sizes = [16, 4], strides = [1, 1]} : vector<16x8xf32> to vector<16x4xf32>
    %24 = vector.extract_strided_slice %10 {offsets = [0, 4], sizes = [16, 4], strides = [1, 1]} : vector<16x8xf32> to vector<16x4xf32>
    %25 = tpu.concatenate %22, %23, %24 in 1 : vector<16x4xf32>, vector<16x4xf32>, vector<16x4xf32> -> vector<16x12xf32>
    %cst_13 = arith.constant dense<0.000000e+00> : vector<16x8xf32>
    %26 = tpu.matmul %25, %11, %cst_13 {dimension_numbers = #tpu.dot_dimension_numbers<[1], [0], [0], [1], [0, 0, 1, 1], [], []>} : vector<16x12xf32>, vector<12x8xf32>, vector<16x8xf32> -> vector<16x8xf32>
    %27 = vector.broadcast %12 : vector<1x8xf32> to vector<16x8xf32>
    %28 = arith.addf %26, %27 : vector<16x8xf32>
    %cst_14 = arith.constant 0.000000e+00 : f32
    %29 = vector.broadcast %cst_14 : f32 to vector<16x8xf32>
    %30 = arith.maximumf %28, %29 : vector<16x8xf32>
    %31 = tpu.concatenate %21, %30 in 1 : vector<16x8xf32>, vector<16x8xf32> -> vector<16x16xf32>
    %c0_15 = arith.constant 0 : index
    %c0_16 = arith.constant 0 : index
    %32 = vector.load %arg7[%c0_15, %c0_16] : memref<16x16xf32, #tpu.memory_space<vmem>>, vector<16x16xf32>
    tpu.vector_store %arg7[%c0_15, %c0_16], %31 {strides = array<i32>} : memref<16x16xf32, #tpu.memory_space<vmem>>, vector<16x16xf32>,
    %cst_17 = arith.constant dense<0.000000e+00> : vector<16xf32>
    %33 = vector.multi_reduction <add>, %31, %cst_17 [0] : vector<16x16xf32> to vector<16xf32>
    %34 = vector.shape_cast %33 : vector<16xf32> to vector<1x16xf32>
    %35 = arith.mulf %31, %31 : vector<16x16xf32>
    %cst_18 = arith.constant dense<0.000000e+00> : vector<16xf32>
    %36 = vector.multi_reduction <add>, %35, %cst_18 [0] : vector<16x16xf32> to vector<16xf32>
    %37 = vector.shape_cast %36 : vector<16xf32> to vector<1x16xf32>
    %38 = tpu.concatenate %34, %37 in 0 : vector<1x16xf32>, vector<1x16xf32> -> vector<2x16xf32>
    %39 = vector.shape_cast %38 : vector<2x16xf32> to vector<1x2x16xf32>
    %c0_19 = arith.constant 0 : index
    %c0_20 = arith.constant 0 : index
    %c0_21 = arith.constant 0 : index
    %40 = vector.load %arg8[%c0_19, %c0_20, %c0_21] : memref<1x2x16xf32, #tpu.memory_space<vmem>>, vector<1x2x16xf32>
    tpu.vector_store %arg8[%c0_19, %c0_20, %c0_21], %39 {strides = array<i32>} : memref<1x2x16xf32, #tpu.memory_space<vmem>>, vector<1x2x16xf32>,
    return
  }
  func.func @transform_0(%arg0: i32) -> (i32, i32) {
    %c0_i32 = arith.constant 0 : i32
    %c0_i32_0 = arith.constant 0 : i32
    %c0_i32_1 = arith.constant 0 : i32
    return %c0_i32, %c0_i32_0 : i32, i32
  }
  func.func @transform_1(%arg0: i32) -> (i32, i32) {
    %c0_i32 = arith.constant 0 : i32
    %c0_i32_0 = arith.constant 0 : i32
    return %c0_i32, %arg0 : i32, i32
  }
  func.func @transform_2(%arg0: i32) -> (i32, i32) {
    %c0_i32 = arith.constant 0 : i32
    %c0_i32_0 = arith.constant 0 : i32
    %c0_i32_1 = arith.constant 0 : i32
    return %c0_i32, %c0_i32_0 : i32, i32
  }
  func.func @transform_3(%arg0: i32) -> (i32, i32) {
    %c0_i32 = arith.constant 0 : i32
    %c0_i32_0 = arith.constant 0 : i32
    %c0_i32_1 = arith.constant 0 : i32
    return %c0_i32, %c0_i32_0 : i32, i32
  }
  func.func @transform_4(%arg0: i32) -> (i32, i32) {
    %c0_i32 = arith.constant 0 : i32
    %c0_i32_0 = arith.constant 0 : i32
    %c0_i32_1 = arith.constant 0 : i32
    return %c0_i32, %c0_i32_0 : i32, i32
  }
  func.func @transform_5(%arg0: i32) -> (i32, i32) {
    %c0_i32 = arith.constant 0 : i32
    %c0_i32_0 = arith.constant 0 : i32
    %c0_i32_1 = arith.constant 0 : i32
    return %c0_i32, %c0_i32_0 : i32, i32
  }
  func.func @transform_6(%arg0: i32) -> (i32, i32) {
    %c0_i32 = arith.constant 0 : i32
    %c0_i32_0 = arith.constant 0 : i32
    return %c0_i32, %arg0 : i32, i32
  }
  func.func @transform_7(%arg0: i32) -> (i32, i32, i32) {
    %c0_i32 = arith.constant 0 : i32
    %c0_i32_0 = arith.constant 0 : i32
    %c0_i32_1 = arith.constant 0 : i32
    return %arg0, %c0_i32, %c0_i32_0 : i32, i32, i32
  }
}

module attributes {stable_mosaic.version = 11 : i64} {
  func.func @_fused_gcn_kernel(%arg0: i32, %arg1: memref<32x16xf32, #tpu.memory_space<vmem>>, %arg2: memref<16x16xf32, #tpu.memory_space<vmem>>, %arg3: memref<1x16xf32, #tpu.memory_space<vmem>>, %arg4: memref<1x16xf32, #tpu.memory_space<vmem>>, %arg5: memref<24x8xf32, #tpu.memory_space<vmem>>, %arg6: memref<1x8xf32, #tpu.memory_space<vmem>>, %arg7: memref<16x16xf32, #tpu.memory_space<vmem>>, %arg8: memref<1x2x16xf32, #tpu.memory_space<vmem>>) attributes {dimension_semantics = [#tpu.dimension_semantics<parallel>], iteration_bounds = array<i64: 1>, scalar_prefetch = 0 : i64, scratch_operands = 0 : i64, tpu.core_type = #tpu.core_type<tc>, window_params = [{pipeline_mode = #tpu.pipeline_mode<synchronous>, transform_indices = @transform_0, window_bounds = array<i64: 32, 16>}, {transform_indices = @transform_1, window_bounds = array<i64: 16, 16>}, {pipeline_mode = #tpu.pipeline_mode<synchronous>, transform_indices = @transform_2, window_bounds = array<i64: 1, 16>}, {pipeline_mode = #tpu.pipeline_mode<synchronous>, transform_indices = @transform_3, window_bounds = array<i64: 1, 16>}, {pipeline_mode = #tpu.pipeline_mode<synchronous>, transform_indices = @transform_4, window_bounds = array<i64: 24, 8>}, {pipeline_mode = #tpu.pipeline_mode<synchronous>, transform_indices = @transform_5, window_bounds = array<i64: 1, 8>}, {transform_indices = @transform_6, window_bounds = array<i64: 16, 16>}, {transform_indices = @transform_7, window_bounds = array<i64: 1, 2, 16>}]} {
    %c0 = arith.constant 0 : index
    %c0_0 = arith.constant 0 : index
    %0 = vector.load %arg2[%c0, %c0_0] : memref<16x16xf32, #tpu.memory_space<vmem>>, vector<16x16xf32>
    %c0_1 = arith.constant 0 : index
    %c0_2 = arith.constant 0 : index
    %1 = vector.load %arg3[%c0_1, %c0_2] : memref<1x16xf32, #tpu.memory_space<vmem>>, vector<1x16xf32>
    %2 = vector.broadcast %1 : vector<1x16xf32> to vector<16x16xf32>
    %3 = arith.mulf %0, %2 : vector<16x16xf32>
    %c0_3 = arith.constant 0 : index
    %c0_4 = arith.constant 0 : index
    %4 = vector.load %arg4[%c0_3, %c0_4] : memref<1x16xf32, #tpu.memory_space<vmem>>, vector<1x16xf32>
    %5 = vector.broadcast %4 : vector<1x16xf32> to vector<16x16xf32>
    %6 = arith.addf %3, %5 : vector<16x16xf32>
    %c0_5 = arith.constant 0 : index
    %c0_6 = arith.constant 0 : index
    %7 = vector.load %arg1[%c0_5, %c0_6] : memref<32x16xf32, #tpu.memory_space<vmem>>, vector<32x16xf32>
    %cst = arith.constant dense<0.000000e+00> : vector<32x16xf32>
    %8 = tpu.matmul %7, %6, %cst {dimension_numbers = #tpu.dot_dimension_numbers<[1], [0], [0], [1], [0, 0, 1, 1], [], []>} : vector<32x16xf32>, vector<16x16xf32>, vector<32x16xf32> -> vector<32x16xf32>
    %9 = vector.extract_strided_slice %8 {offsets = [0, 0], sizes = [16, 16], strides = [1, 1]} : vector<32x16xf32> to vector<16x16xf32>
    %10 = vector.extract_strided_slice %8 {offsets = [16, 0], sizes = [16, 16], strides = [1, 1]} : vector<32x16xf32> to vector<16x16xf32>
    %c0_7 = arith.constant 0 : index
    %c0_8 = arith.constant 0 : index
    %11 = vector.load %arg5[%c0_7, %c0_8] : memref<24x8xf32, #tpu.memory_space<vmem>>, vector<24x8xf32>
    %c0_9 = arith.constant 0 : index
    %c0_10 = arith.constant 0 : index
    %12 = vector.load %arg6[%c0_9, %c0_10] : memref<1x8xf32, #tpu.memory_space<vmem>>, vector<1x8xf32>
    %13 = vector.extract_strided_slice %6 {offsets = [0, 0], sizes = [16, 8], strides = [1, 1]} : vector<16x16xf32> to vector<16x8xf32>
    %14 = vector.extract_strided_slice %9 {offsets = [0, 0], sizes = [16, 8], strides = [1, 1]} : vector<16x16xf32> to vector<16x8xf32>
    %15 = vector.extract_strided_slice %10 {offsets = [0, 0], sizes = [16, 8], strides = [1, 1]} : vector<16x16xf32> to vector<16x8xf32>
    %16 = tpu.concatenate %13, %14, %15 in 1 : vector<16x8xf32>, vector<16x8xf32>, vector<16x8xf32> -> vector<16x24xf32>
    %cst_11 = arith.constant dense<0.000000e+00> : vector<16x8xf32>
    %17 = tpu.matmul %16, %11, %cst_11 {dimension_numbers = #tpu.dot_dimension_numbers<[1], [0], [0], [1], [0, 0, 1, 1], [], []>} : vector<16x24xf32>, vector<24x8xf32>, vector<16x8xf32> -> vector<16x8xf32>
    %18 = vector.broadcast %12 : vector<1x8xf32> to vector<16x8xf32>
    %19 = arith.addf %17, %18 : vector<16x8xf32>
    %cst_12 = arith.constant 0.000000e+00 : f32
    %20 = vector.broadcast %cst_12 : f32 to vector<16x8xf32>
    %21 = arith.maximumf %19, %20 : vector<16x8xf32>
    %22 = vector.extract_strided_slice %6 {offsets = [0, 8], sizes = [16, 8], strides = [1, 1]} : vector<16x16xf32> to vector<16x8xf32>
    %23 = vector.extract_strided_slice %9 {offsets = [0, 8], sizes = [16, 8], strides = [1, 1]} : vector<16x16xf32> to vector<16x8xf32>
    %24 = vector.extract_strided_slice %10 {offsets = [0, 8], sizes = [16, 8], strides = [1, 1]} : vector<16x16xf32> to vector<16x8xf32>
    %25 = tpu.concatenate %22, %23, %24 in 1 : vector<16x8xf32>, vector<16x8xf32>, vector<16x8xf32> -> vector<16x24xf32>
    %cst_13 = arith.constant dense<0.000000e+00> : vector<16x8xf32>
    %26 = tpu.matmul %25, %11, %cst_13 {dimension_numbers = #tpu.dot_dimension_numbers<[1], [0], [0], [1], [0, 0, 1, 1], [], []>} : vector<16x24xf32>, vector<24x8xf32>, vector<16x8xf32> -> vector<16x8xf32>
    %27 = vector.broadcast %12 : vector<1x8xf32> to vector<16x8xf32>
    %28 = arith.addf %26, %27 : vector<16x8xf32>
    %cst_14 = arith.constant 0.000000e+00 : f32
    %29 = vector.broadcast %cst_14 : f32 to vector<16x8xf32>
    %30 = arith.maximumf %28, %29 : vector<16x8xf32>
    %31 = tpu.concatenate %21, %30 in 1 : vector<16x8xf32>, vector<16x8xf32> -> vector<16x16xf32>
    %c0_15 = arith.constant 0 : index
    %c0_16 = arith.constant 0 : index
    %32 = vector.load %arg7[%c0_15, %c0_16] : memref<16x16xf32, #tpu.memory_space<vmem>>, vector<16x16xf32>
    tpu.vector_store %arg7[%c0_15, %c0_16], %31 {strides = array<i32>} : memref<16x16xf32, #tpu.memory_space<vmem>>, vector<16x16xf32>,
    %cst_17 = arith.constant dense<0.000000e+00> : vector<16xf32>
    %33 = vector.multi_reduction <add>, %31, %cst_17 [0] : vector<16x16xf32> to vector<16xf32>
    %34 = vector.shape_cast %33 : vector<16xf32> to vector<1x16xf32>
    %35 = arith.mulf %31, %31 : vector<16x16xf32>
    %cst_18 = arith.constant dense<0.000000e+00> : vector<16xf32>
    %36 = vector.multi_reduction <add>, %35, %cst_18 [0] : vector<16x16xf32> to vector<16xf32>
    %37 = vector.shape_cast %36 : vector<16xf32> to vector<1x16xf32>
    %38 = tpu.concatenate %34, %37 in 0 : vector<1x16xf32>, vector<1x16xf32> -> vector<2x16xf32>
    %39 = vector.shape_cast %38 : vector<2x16xf32> to vector<1x2x16xf32>
    %c0_19 = arith.constant 0 : index
    %c0_20 = arith.constant 0 : index
    %c0_21 = arith.constant 0 : index
    %40 = vector.load %arg8[%c0_19, %c0_20, %c0_21] : memref<1x2x16xf32, #tpu.memory_space<vmem>>, vector<1x2x16xf32>
    tpu.vector_store %arg8[%c0_19, %c0_20, %c0_21], %39 {strides = array<i32>} : memref<1x2x16xf32, #tpu.memory_space<vmem>>, vector<1x2x16xf32>,
    return
  }
  func.func @transform_0(%arg0: i32) -> (i32, i32) {
    %c0_i32 = arith.constant 0 : i32
    %c0_i32_0 = arith.constant 0 : i32
    %c0_i32_1 = arith.constant 0 : i32
    return %c0_i32, %c0_i32_0 : i32, i32
  }
  func.func @transform_1(%arg0: i32) -> (i32, i32) {
    %c0_i32 = arith.constant 0 : i32
    %c0_i32_0 = arith.constant 0 : i32
    return %c0_i32, %arg0 : i32, i32
  }
  func.func @transform_2(%arg0: i32) -> (i32, i32) {
    %c0_i32 = arith.constant 0 : i32
    %c0_i32_0 = arith.constant 0 : i32
    %c0_i32_1 = arith.constant 0 : i32
    return %c0_i32, %c0_i32_0 : i32, i32
  }
  func.func @transform_3(%arg0: i32) -> (i32, i32) {
    %c0_i32 = arith.constant 0 : i32
    %c0_i32_0 = arith.constant 0 : i32
    %c0_i32_1 = arith.constant 0 : i32
    return %c0_i32, %c0_i32_0 : i32, i32
  }
  func.func @transform_4(%arg0: i32) -> (i32, i32) {
    %c0_i32 = arith.constant 0 : i32
    %c0_i32_0 = arith.constant 0 : i32
    %c0_i32_1 = arith.constant 0 : i32
    return %c0_i32, %c0_i32_0 : i32, i32
  }
  func.func @transform_5(%arg0: i32) -> (i32, i32) {
    %c0_i32 = arith.constant 0 : i32
    %c0_i32_0 = arith.constant 0 : i32
    %c0_i32_1 = arith.constant 0 : i32
    return %c0_i32, %c0_i32_0 : i32, i32
  }
  func.func @transform_6(%arg0: i32) -> (i32, i32) {
    %c0_i32 = arith.constant 0 : i32
    %c0_i32_0 = arith.constant 0 : i32
    return %c0_i32, %arg0 : i32, i32
  }
  func.func @transform_7(%arg0: i32) -> (i32, i32, i32) {
    %c0_i32 = arith.constant 0 : i32
    %c0_i32_0 = arith.constant 0 : i32
    %c0_i32_1 = arith.constant 0 : i32
    return %arg0, %c0_i32, %c0_i32_0 : i32, i32, i32
  }
}

</mosaic_0001>

<llo_original>
// kernel: tile.13
$region0: #{tile.13}
  #allocation0 [shape = 's32[1]{0}', space=sflag, size = 0x4, scoped, tag = 'scoped memory for tile.13']
  %s0 = inlined_call_operand.vmem [shape: f32[8], index: 0, kind: input, shape index: {}]
  %s1 = inlined_call_operand.vmem [shape: f32[2,8], index: 1, kind: output, shape index: {}]
  // Predicated region
  $region2: #{tile.13} parent=0 // pred_check
    _
  $region3: #{tile.13} parent=0 // pred_check_branch
    %3 = sbr.rel (0) target = $region5
  $region4: #{tile.13} parent=0 // pred_region
    _
  $region5: #{tile.13} parent=0 // pred_fallthru
    _
  %v4 = vld [vmem:[%s0] ss:$0 sm:$0xff]
  %5 = vst [vmem:[%s1] sm:$0x3] %v4

// kernel: tile.14
$region0: #{tile.14}
  %s0 = inlined_call_operand.vmem [shape: f32[2,8], index: 0, kind: input, shape index: {}]
  %s1 = inlined_call_operand.vmem [shape: f32[1,16], index: 1, kind: output, shape index: {}]
  $region1: #{tile.14} parent=0
    #allocation0 [shape = 'u8[4096]{0}', space=vmem, size = 0x1000, scoped, tag = 'scoped mem for output reshape']
    #allocation1 [shape = 'u8[4096]{0}', space=vmem, size = 0x1000, scoped, tag = 'scoped mem for input reshape']
    %s3 = sshllo.u32 0, 2
    %v4 = vld [vmem:[%s0] sm:%s3]
    %5 = vst [vmem:[#allocation1] sm:%s3] %v4
    %v6 = vld [vmem:[#allocation1] sm:$0x1]
    %vm7 = vcmask 64512
    %8 = vst.msk [vmem:[#allocation0] sm:$0x1] %vm7, %v6
    %s9 = scalar_lea.vmem [#allocation1], 1
    %v10 = vld [vmem:[%s9] sm:$0x1]
    %11 = vrot.lane.b32.xlu0 %v10, 8
    %v12 = vpop.permute.xlu0 %11
    %vm13 = vcmask 130112
    %14 = vst.msk [vmem:[#allocation0] sm:$0x1] %vm13, %v12
    %s16 = sshllo.u32 0, 1
    %v18 = vld [vmem:[#allocation0] sm:%s16]
    %s19 = sshllo.u32 0, 1
    %20 = vst [vmem:[%s1] sm:%s19] %v18

// kernel: unet_conv_block.2
$region0: #{unet_conv_block.2}
  #allocation0 [shape = 'u32[]', space=smem, size = 0x4, offset = 0x4, fixed_abs, tag = 'smem constant byte address 0x4 - core index']
  #allocation1 [shape = 'u32[144,128]{1,0:T(1,128)}', space=vmem, size = 0x12000, scoped, tag = 'internal scratch']
  %s0 = inlined_call_operand.vmem [shape: f32[32,16], index: 0, kind: input, shape index: {}]
  %s1 = inlined_call_operand.vmem [shape: f32[16,8], index: 1, kind: input, shape index: {}]
  %s2 = inlined_call_operand.vmem [shape: f32[1,8], index: 2, kind: input, shape index: {}]
  %s3 = inlined_call_operand.vmem [shape: f32[1,8], index: 3, kind: input, shape index: {}]
  %s4 = inlined_call_operand.vmem [shape: f32[12,8], index: 4, kind: input, shape index: {}]
  %s5 = inlined_call_operand.vmem [shape: f32[1,8], index: 5, kind: input, shape index: {}]
  %s6 = inlined_call_operand.vmem [shape: f32[16,16], index: 6, kind: output, shape index: {0}]
  %s7 = inlined_call_operand.vmem [shape: f32[1,2,16], index: 7, kind: output, shape index: {1}]
  %8 = xla_tuple %s6, %s7
  %s9 = sld [smem:[#allocation0]]
  $region42: #{unet_conv_block.2} parent=0
    _
  %s11 = ssub.s32 1, %s9
  %s12 = scalar_select 0, %s11, %s9
  // Predicated region
  $region2: #{unet_conv_block.2} parent=0 // pred_check
    _
  $region3: #{unet_conv_block.2} parent=0 // pred_check_branch
    %14 = sbr.rel (0) target = $region5
  $region4: #{unet_conv_block.2} parent=0 // pred_region
    _
  $region5: #{unet_conv_block.2} parent=0 // pred_fallthru
    _
  // Predicated region
  $region6: #{unet_conv_block.2} parent=0 // pred_check
    _
  $region7: #{unet_conv_block.2} parent=0 // pred_check_branch
    %16 = sbr.rel (0) target = $region9
  $region8: #{unet_conv_block.2} parent=0 // pred_region
    _
  $region9: #{unet_conv_block.2} parent=0 // pred_fallthru
    _
  // Predicated region
  $region10: #{unet_conv_block.2} parent=0 // pred_check
    _
  $region11: #{unet_conv_block.2} parent=0 // pred_check_branch
    %18 = sbr.rel (0) target = $region13
  $region12: #{unet_conv_block.2} parent=0 // pred_region
    _
  $region13: #{unet_conv_block.2} parent=0 // pred_fallthru
    _
  // Predicated region
  $region14: #{unet_conv_block.2} parent=0 // pred_check
    _
  $region15: #{unet_conv_block.2} parent=0 // pred_check_branch
    %20 = sbr.rel (0) target = $region17
  $region16: #{unet_conv_block.2} parent=0 // pred_region
    _
  $region17: #{unet_conv_block.2} parent=0 // pred_fallthru
    _
  // Predicated region
  $region18: #{unet_conv_block.2} parent=0 // pred_check
    _
  $region19: #{unet_conv_block.2} parent=0 // pred_check_branch
    %22 = sbr.rel (0) target = $region21
  $region20: #{unet_conv_block.2} parent=0 // pred_region
    _
  $region21: #{unet_conv_block.2} parent=0 // pred_fallthru
    _
  // Predicated region
  $region22: #{unet_conv_block.2} parent=0 // pred_check
    _
  $region23: #{unet_conv_block.2} parent=0 // pred_check_branch
    %24 = sbr.rel (0) target = $region25
  $region24: #{unet_conv_block.2} parent=0 // pred_region
    _
  $region25: #{unet_conv_block.2} parent=0 // pred_fallthru
    _
  %v25 = vld [vmem:[%s1] sm:$0xff]
  %v26 = vld [vmem:[%s1 + $0x8] sm:$0xff]
  %v27 = vld [vmem:[%s2] sm:$0x1]
  %v29 = vlaneseq
  %v30 = vshrl.u32 %v29, 7
  %v31 = vsub.s32 0, %v30
  %v32 = vrot.slane %v27, %v31
  %v34 = vmul.f32 %v25, %v32
  %v35 = vmul.f32 %v26, %v32
  %v36 = vld [vmem:[%s3] sm:$0x1]
  %v38 = vlaneseq
  %v39 = vshrl.u32 %v38, 7
  %v40 = vsub.s32 0, %v39
  %v41 = vrot.slane %v36, %v40
  %v43 = vadd.f32 %v34, %v41
  %v44 = vadd.f32 %v35, %v41
  %v45 = vld [vmem:[%s0] sm:$0xff]
  %v46 = vld [vmem:[%s0 + $0x8] sm:$0xff]
  %v47 = vld [vmem:[%s0 + $0x10] sm:$0xff]
  %v48 = vld [vmem:[%s0 + $0x18] sm:$0xff]
  %vm49 = vcmask 130048
  %v51 = vsel %vm49, %v45, 0
  %v54 = vsel %vm49, %v46, 0
  %v57 = vsel %vm49, %v47, 0
  %v60 = vsel %vm49, %v48, 0
  %62 = vmatprep.subr.mxu0 0.0
  %63 = vmatpush1.msra.mxu0 %v43
  %64 = vmatprep.subr.mxu0 0.0
  %65 = vmatpush1.msra.mxu0 %v44
  %66 = vmatprep.subr.mxu0 0.0
  %67 = vmatpush1.msra.mxu0 0.0
  %68 = vmatprep.subr.mxu0 0.0
  %69 = vmatpush1.msra.mxu0 0.0
  %70 = vmatprep.subr.mxu0 0.0
  %71 = vmatpush1.msra.mxu0 0.0
  %72 = vmatprep.subr.mxu0 0.0
  %73 = vmatpush1.msra.mxu0 0.0
  %74 = vmatprep.subr.mxu0 0.0
  %75 = vmatpush1.msra.mxu0 0.0
  %76 = vmatprep.subr.mxu0 0.0
  %77 = vmatpush1.msra.mxu0 0.0
  %78 = vmatprep.subr.mxu0 0.0
  %79 = vmatpush1.msra.mxu0 0.0
  %80 = vmatprep.subr.mxu0 0.0
  %81 = vmatpush1.msra.mxu0 0.0
  %82 = vmatprep.subr.mxu0 0.0
  %83 = vmatpush1.msra.mxu0 0.0
  %84 = vmatprep.subr.mxu0 0.0
  %85 = vmatpush1.msra.mxu0 0.0
  %86 = vmatprep.subr.mxu0 0.0
  %87 = vmatpush1.msra.mxu0 0.0
  %88 = vmatprep.subr.mxu0 0.0
  %89 = vmatpush1.msra.mxu0 0.0
  %90 = vmatprep.subr.mxu0 0.0
  %91 = vmatpush1.msra.mxu0 0.0
  %92 = vmatprep.subr.mxu0 0.0
  %93 = vmatpush1.msra.mxu0 0.0
  %94 = vmatprep.subr.mxu0 0.0
  %95 = vmatpush1.msra.mxu0 0.0
  %96 = vmatprep.subr.mxu0 0.0
  %97 = vmatpush1.msra.mxu0 0.0
  %98 = vmatprep.subr.mxu0 0.0
  %99 = vmatpush1.msra.mxu0 0.0
  %100 = vmatprep.subr.mxu0 0.0
  %101 = vmatpush1.msra.mxu0 0.0
  %102 = vmatprep.subr.mxu0 0.0
  %103 = vmatpush1.msra.mxu0 0.0
  %104 = vmatprep.subr.mxu0 0.0
  %105 = vmatpush1.msra.mxu0 0.0
  %106 = vmatprep.subr.mxu0 0.0
  %107 = vmatpush1.msra.mxu0 0.0
  %108 = vmatprep.subr.mxu0 0.0
  %109 = vmatpush1.msra.mxu0 0.0
  %110 = vmatprep.subr.mxu0 0.0
  %111 = vmatpush1.msra.mxu0 0.0
  %112 = vmatprep.subr.mxu0 0.0
  %113 = vmatpush1.msra.mxu0 0.0
  %114 = vmatprep.subr.mxu0 0.0
  %115 = vmatpush1.msra.mxu0 0.0
  %116 = vmatprep.subr.mxu0 0.0
  %117 = vmatpush1.msra.mxu0 0.0
  %118 = vmatprep.subr.mxu0 0.0
  %119 = vmatpush1.msra.mxu0 0.0
  %120 = vmatprep.subr.mxu0 0.0
  %121 = vmatpush1.msra.mxu0 0.0
  %122 = vmatprep.subr.mxu0 0.0
  %123 = vmatpush1.msra.mxu0 0.0
  %124 = vmatprep.subr.mxu0 0.0
  %125 = vmatpush1.msra.mxu0 0.0
  %126 = vmatprep.mubr.f32.mxu0 0.0
  %127 = vmatmul.mubr.f32.gmra.mrb[0].mxu0 %v51
  %v128 = vpop.f32.mrb[0].mxu0
  %v129 = vadd.f32 0.0, %v128
  %v130 = vpop.f32.mrb[0].mxu0
  %131 = vmatprep.mubr.f32.mxu0 0.0
  %132 = vmatmul.mubr.f32.gmra.mrb[0].mxu0 %v54
  %v133 = vpop.f32.mrb[0].mxu0
  %v134 = vadd.f32 0.0, %v133
  %v135 = vpop.f32.mrb[0].mxu0
  %136 = vmatprep.mubr.f32.mxu0 0.0
  %137 = vmatmul.mubr.f32.gmra.mrb[0].mxu0 %v57
  %v138 = vpop.f32.mrb[0].mxu0
  %v139 = vadd.f32 0.0, %v138
  %v140 = vpop.f32.mrb[0].mxu0
  %141 = vmatprep.mubr.f32.mxu0 0.0
  %142 = vmatmul.mubr.f32.gmra.mrb[0].mxu0 %v60
  %v143 = vpop.f32.mrb[0].mxu0
  %v144 = vadd.f32 0.0, %v143
  %v145 = vpop.f32.mrb[0].mxu0
  %146 = vdwg.mxu0
  %v147 = vld [vmem:[%s4] sm:$0xff]
  %v148 = vld [vmem:[%s4 + $0x8] sm:$0xf]
  %v149 = vld [vmem:[%s5] sm:$0x1]
  %152 = vrot.lane.b32.xlu0 %v129, 4
  %v153 = vpop.permute.xlu0 %152
  %154 = vrot.lane.b32.xlu0 %v134, 4
  %v155 = vpop.permute.xlu0 %154
  %160 = vrot.lane.b32.xlu0 %v139, 8
  %v161 = vpop.permute.xlu0 %160
  %162 = vrot.lane.b32.xlu0 %v144, 8
  %v163 = vpop.permute.xlu0 %162
  %vm166 = vcmask 31744
  %v167 = vsel %vm166, %v43, %v153
  %v168 = vsel %vm166, %v44, %v155
  %vm169 = vcmask 64512
  %v170 = vsel %vm169, %v167, %v161
  %v171 = vsel %vm169, %v168, %v163
  %v173 = vlaneseq
  %v174 = vshrl.u32 %v173, 7
  %v175 = vsub.s32 0, %v174
  %v176 = vrot.slane %v149, %v175
  %vm178 = vcmask 97280
  %v180 = vsel %vm178, %v170, 0
  %v183 = vsel %vm178, %v171, 0
  %vm185 = vcmask 1043456
  %v187 = vsel %vm185, %v148, 0
  %189 = vmatprep.subr.mxu0 0.0
  %190 = vmatpush1.msra.mxu0 %v147
  %191 = vmatprep.subr.mxu0 0.0
  %192 = vmatpush1.msra.mxu0 %v187
  %193 = vmatprep.subr.mxu0 0.0
  %194 = vmatpush1.msra.mxu0 0.0
  %195 = vmatprep.subr.mxu0 0.0
  %196 = vmatpush1.msra.mxu0 0.0
  %197 = vmatprep.subr.mxu0 0.0
  %198 = vmatpush1.msra.mxu0 0.0
  %199 = vmatprep.subr.mxu0 0.0
  %200 = vmatpush1.msra.mxu0 0.0
  %201 = vmatprep.subr.mxu0 0.0
  %202 = vmatpush1.msra.mxu0 0.0
  %203 = vmatprep.subr.mxu0 0.0
  %204 = vmatpush1.msra.mxu0 0.0
  %205 = vmatprep.subr.mxu0 0.0
  %206 = vmatpush1.msra.mxu0 0.0
  %207 = vmatprep.subr.mxu0 0.0
  %208 = vmatpush1.msra.mxu0 0.0
  %209 = vmatprep.subr.mxu0 0.0
  %210 = vmatpush1.msra.mxu0 0.0
  %211 = vmatprep.subr.mxu0 0.0
  %212 = vmatpush1.msra.mxu0 0.0
  %213 = vmatprep.subr.mxu0 0.0
  %214 = vmatpush1.msra.mxu0 0.0
  %215 = vmatprep.subr.mxu0 0.0
  %216 = vmatpush1.msra.mxu0 0.0
  %217 = vmatprep.subr.mxu0 0.0
  %218 = vmatpush1.msra.mxu0 0.0
  %219 = vmatprep.subr.mxu0 0.0
  %220 = vmatpush1.msra.mxu0 0.0
  %221 = vmatprep.subr.mxu0 0.0
  %222 = vmatpush1.msra.mxu0 0.0
  %223 = vmatprep.subr.mxu0 0.0
  %224 = vmatpush1.msra.mxu0 0.0
  %225 = vmatprep.subr.mxu0 0.0
  %226 = vmatpush1.msra.mxu0 0.0
  %227 = vmatprep.subr.mxu0 0.0
  %228 = vmatpush1.msra.mxu0 0.0
  %229 = vmatprep.subr.mxu0 0.0
  %230 = vmatpush1.msra.mxu0 0.0
  %231 = vmatprep.subr.mxu0 0.0
  %232 = vmatpush1.msra.mxu0 0.0
  %233 = vmatprep.subr.mxu0 0.0
  %234 = vmatpush1.msra.mxu0 0.0
  %235 = vmatprep.subr.mxu0 0.0
  %236 = vmatpush1.msra.mxu0 0.0
  %237 = vmatprep.subr.mxu0 0.0
  %238 = vmatpush1.msra.mxu0 0.0
  %239 = vmatprep.subr.mxu0 0.0
  %240 = vmatpush1.msra.mxu0 0.0
  %241 = vmatprep.subr.mxu0 0.0
  %242 = vmatpush1.msra.mxu0 0.0
  %243 = vmatprep.subr.mxu0 0.0
  %244 = vmatpush1.msra.mxu0 0.0
  %245 = vmatprep.subr.mxu0 0.0
  %246 = vmatpush1.msra.mxu0 0.0
  %247 = vmatprep.subr.mxu0 0.0
  %248 = vmatpush1.msra.mxu0 0.0
  %249 = vmatprep.subr.mxu0 0.0
  %250 = vmatpush1.msra.mxu0 0.0
  %251 = vmatprep.subr.mxu0 0.0
  %252 = vmatpush1.msra.mxu0 0.0
  %253 = vmatprep.mubr.f32.mxu0 0.0
  %254 = vmatmul.mubr.f32.gmra.mrb[0].mxu0 %v180
  %v255 = vpop.f32.mrb[0].mxu0
  %v256 = vadd.f32 %v176, %v255
  %v257 = vpop.f32.mrb[0].mxu0
  %258 = vmatprep.mubr.f32.mxu0 0.0
  %259 = vmatmul.mubr.f32.gmra.mrb[0].mxu0 %v183
  %v260 = vpop.f32.mrb[0].mxu0
  %v261 = vadd.f32 %v176, %v260
  %v262 = vpop.f32.mrb[0].mxu0
  %263 = vdwg.mxu0
  %v264 = vmax.f32 %v256, 0.0
  %v265 = vmax.f32 %v261, 0.0
  %268 = vrot.lane.b32.xlu0 %v43, 124
  %v269 = vpop.permute.xlu0 %268
  %270 = vrot.lane.b32.xlu0 %v44, 124
  %v271 = vpop.permute.xlu0 %270
  %274 = vrot.lane.b32.xlu0 %v139, 4
  %v275 = vpop.permute.xlu0 %274
  %276 = vrot.lane.b32.xlu0 %v144, 4
  %v277 = vpop.permute.xlu0 %276
  %v280 = vsel %vm166, %v269, %v129
  %v281 = vsel %vm166, %v271, %v134
  %v282 = vsel %vm169, %v280, %v275
  %v283 = vsel %vm169, %v281, %v277
  %v285 = vsel %vm178, %v282, 0
  %v288 = vsel %vm178, %v283, 0
  %290 = vmatprep.subr.mxu0 0.0
  %291 = vmatpush1.msra.mxu0 %v147
  %292 = vmatprep.subr.mxu0 0.0
  %293 = vmatpush1.msra.mxu0 %v187
  %294 = vmatprep.subr.mxu0 0.0
  %295 = vmatpush1.msra.mxu0 0.0
  %296 = vmatprep.subr.mxu0 0.0
  %297 = vmatpush1.msra.mxu0 0.0
  %298 = vmatprep.subr.mxu0 0.0
  %299 = vmatpush1.msra.mxu0 0.0
  %300 = vmatprep.subr.mxu0 0.0
  %301 = vmatpush1.msra.mxu0 0.0
  %302 = vmatprep.subr.mxu0 0.0
  %303 = vmatpush1.msra.mxu0 0.0
  %304 = vmatprep.subr.mxu0 0.0
  %305 = vmatpush1.msra.mxu0 0.0
  %306 = vmatprep.subr.mxu0 0.0
  %307 = vmatpush1.msra.mxu0 0.0
  %308 = vmatprep.subr.mxu0 0.0
  %309 = vmatpush1.msra.mxu0 0.0
  %310 = vmatprep.subr.mxu0 0.0
  %311 = vmatpush1.msra.mxu0 0.0
  %312 = vmatprep.subr.mxu0 0.0
  %313 = vmatpush1.msra.mxu0 0.0
  %314 = vmatprep.subr.mxu0 0.0
  %315 = vmatpush1.msra.mxu0 0.0
  %316 = vmatprep.subr.mxu0 0.0
  %317 = vmatpush1.msra.mxu0 0.0
  %318 = vmatprep.subr.mxu0 0.0
  %319 = vmatpush1.msra.mxu0 0.0
  %320 = vmatprep.subr.mxu0 0.0
  %321 = vmatpush1.msra.mxu0 0.0
  %322 = vmatprep.subr.mxu0 0.0
  %323 = vmatpush1.msra.mxu0 0.0
  %324 = vmatprep.subr.mxu0 0.0
  %325 = vmatpush1.msra.mxu0 0.0
  %326 = vmatprep.subr.mxu0 0.0
  %327 = vmatpush1.msra.mxu0 0.0
  %328 = vmatprep.subr.mxu0 0.0
  %329 = vmatpush1.msra.mxu0 0.0
  %330 = vmatprep.subr.mxu0 0.0
  %331 = vmatpush1.msra.mxu0 0.0
  %332 = vmatprep.subr.mxu0 0.0
  %333 = vmatpush1.msra.mxu0 0.0
  %334 = vmatprep.subr.mxu0 0.0
  %335 = vmatpush1.msra.mxu0 0.0
  %336 = vmatprep.subr.mxu0 0.0
  %337 = vmatpush1.msra.mxu0 0.0
  %338 = vmatprep.subr.mxu0 0.0
  %339 = vmatpush1.msra.mxu0 0.0
  %340 = vmatprep.subr.mxu0 0.0
  %341 = vmatpush1.msra.mxu0 0.0
  %342 = vmatprep.subr.mxu0 0.0
  %343 = vmatpush1.msra.mxu0 0.0
  %344 = vmatprep.subr.mxu0 0.0
  %345 = vmatpush1.msra.mxu0 0.0
  %346 = vmatprep.subr.mxu0 0.0
  %347 = vmatpush1.msra.mxu0 0.0
  %348 = vmatprep.subr.mxu0 0.0
  %349 = vmatpush1.msra.mxu0 0.0
  %350 = vmatprep.subr.mxu0 0.0
  %351 = vmatpush1.msra.mxu0 0.0
  %352 = vmatprep.subr.mxu0 0.0
  %353 = vmatpush1.msra.mxu0 0.0
  %354 = vmatprep.mubr.f32.mxu0 0.0
  %355 = vmatmul.mubr.f32.gmra.mrb[0].mxu0 %v285
  %v356 = vpop.f32.mrb[0].mxu0
  %v357 = vadd.f32 %v176, %v356
  %v358 = vpop.f32.mrb[0].mxu0
  %359 = vmatprep.mubr.f32.mxu0 0.0
  %360 = vmatmul.mubr.f32.gmra.mrb[0].mxu0 %v288
  %v361 = vpop.f32.mrb[0].mxu0
  %v362 = vadd.f32 %v176, %v361
  %v363 = vpop.f32.mrb[0].mxu0
  %364 = vdwg.mxu0
  %v365 = vmax.f32 %v357, 0.0
  %v366 = vmax.f32 %v362, 0.0
  %369 = vrot.lane.b32.xlu0 %v365, 8
  %v370 = vpop.permute.xlu0 %369
  %371 = vrot.lane.b32.xlu0 %v366, 8
  %v372 = vpop.permute.xlu0 %371
  %v375 = vsel %vm169, %v264, %v370
  %v376 = vsel %vm169, %v265, %v372
  %377 = vst.msk [vmem:[%s6] sm:$0xff] %vm49, %v375
  %378 = vst.msk [vmem:[%s6 + $0x8] sm:$0xff] %vm49, %v376
  %v379 = vsel %vm49, %v375, 0.0
  %v380 = vsel %vm49, %v376, 0.0
  %v381 = vadd.f32 %v379, %v380
  %v382 = vrot.slane %v381, 4
  %v383 = vadd.f32 %v381, %v382
  %v384 = vrot.slane %v383, 2
  %v385 = vadd.f32 %v383, %v384
  %v386 = vrot.slane %v385, 1
  %v387 = vadd.f32 %v385, %v386
  %v388 = vmul.f32 %v375, %v375
  %v389 = vmul.f32 %v376, %v376
  %v390 = vsel %vm49, %v388, 0.0
  %v391 = vsel %vm49, %v389, 0.0
  %v392 = vadd.f32 %v390, %v391
  %v393 = vrot.slane %v392, 4
  %v394 = vadd.f32 %v392, %v393
  %v395 = vrot.slane %v394, 2
  %v396 = vadd.f32 %v394, %v395
  %v397 = vrot.slane %v396, 1
  %v398 = vadd.f32 %v396, %v397
  %vm399 = vcmask 1040384
  %v400 = vsel %vm399, %v387, %v398
  %vm401 = vcmask 123904
  %402 = vst.msk [vmem:[%s7] sm:$0x3] %vm401, %v400
  // Predicated region
  $region26: #{unet_conv_block.2} parent=0 // pred_check
    _
  $region27: #{unet_conv_block.2} parent=0 // pred_check_branch
    %404 = sbr.rel (0) target = $region29
  $region28: #{unet_conv_block.2} parent=0 // pred_region
    _
  $region29: #{unet_conv_block.2} parent=0 // pred_fallthru
    _
  // Predicated region
  $region30: #{unet_conv_block.2} parent=0 // pred_check
    _
  $region31: #{unet_conv_block.2} parent=0 // pred_check_branch
    %406 = sbr.rel (0) target = $region33
  $region32: #{unet_conv_block.2} parent=0 // pred_region
    _
  $region33: #{unet_conv_block.2} parent=0 // pred_fallthru
    _
  // Predicated region
  $region34: #{unet_conv_block.2} parent=0 // pred_check
    _
  $region35: #{unet_conv_block.2} parent=0 // pred_check_branch
    %408 = sbr.rel (0) target = $region37
  $region36: #{unet_conv_block.2} parent=0 // pred_region
    _
  $region37: #{unet_conv_block.2} parent=0 // pred_fallthru
    _
  // Predicated region
  $region38: #{unet_conv_block.2} parent=0 // pred_check
    _
  $region39: #{unet_conv_block.2} parent=0 // pred_check_branch
    %410 = sbr.rel (0) target = $region41
  $region40: #{unet_conv_block.2} parent=0 // pred_region
    _
  $region41: #{unet_conv_block.2} parent=0 // pred_fallthru
    _

// kernel: unet_conv_block.3
$region0: #{unet_conv_block.3}
  #allocation0 [shape = 'u32[]', space=smem, size = 0x4, offset = 0x4, fixed_abs, tag = 'smem constant byte address 0x4 - core index']
  #allocation1 [shape = 'u32[144,128]{1,0:T(1,128)}', space=vmem, size = 0x12000, scoped, tag = 'internal scratch']
  %s0 = inlined_call_operand.vmem [shape: f32[32,16], index: 0, kind: input, shape index: {}]
  %s1 = inlined_call_operand.vmem [shape: f32[16,16], index: 1, kind: input, shape index: {}]
  %s2 = inlined_call_operand.vmem [shape: f32[1,16], index: 2, kind: input, shape index: {}]
  %s3 = inlined_call_operand.vmem [shape: f32[1,16], index: 3, kind: input, shape index: {}]
  %s4 = inlined_call_operand.vmem [shape: f32[24,8], index: 4, kind: input, shape index: {}]
  %s5 = inlined_call_operand.vmem [shape: f32[1,8], index: 5, kind: input, shape index: {}]
  %s6 = inlined_call_operand.vmem [shape: f32[16,16], index: 6, kind: output, shape index: {0}]
  %s7 = inlined_call_operand.vmem [shape: f32[1,2,16], index: 7, kind: output, shape index: {1}]
  %8 = xla_tuple %s6, %s7
  %s9 = sld [smem:[#allocation0]]
  $region42: #{unet_conv_block.3} parent=0
    _
  %s11 = ssub.s32 1, %s9
  %s12 = scalar_select 0, %s11, %s9
  // Predicated region
  $region2: #{unet_conv_block.3} parent=0 // pred_check
    _
  $region3: #{unet_conv_block.3} parent=0 // pred_check_branch
    %14 = sbr.rel (0) target = $region5
  $region4: #{unet_conv_block.3} parent=0 // pred_region
    _
  $region5: #{unet_conv_block.3} parent=0 // pred_fallthru
    _
  // Predicated region
  $region6: #{unet_conv_block.3} parent=0 // pred_check
    _
  $region7: #{unet_conv_block.3} parent=0 // pred_check_branch
    %16 = sbr.rel (0) target = $region9
  $region8: #{unet_conv_block.3} parent=0 // pred_region
    _
  $region9: #{unet_conv_block.3} parent=0 // pred_fallthru
    _
  // Predicated region
  $region10: #{unet_conv_block.3} parent=0 // pred_check
    _
  $region11: #{unet_conv_block.3} parent=0 // pred_check_branch
    %18 = sbr.rel (0) target = $region13
  $region12: #{unet_conv_block.3} parent=0 // pred_region
    _
  $region13: #{unet_conv_block.3} parent=0 // pred_fallthru
    _
  // Predicated region
  $region14: #{unet_conv_block.3} parent=0 // pred_check
    _
  $region15: #{unet_conv_block.3} parent=0 // pred_check_branch
    %20 = sbr.rel (0) target = $region17
  $region16: #{unet_conv_block.3} parent=0 // pred_region
    _
  $region17: #{unet_conv_block.3} parent=0 // pred_fallthru
    _
  // Predicated region
  $region18: #{unet_conv_block.3} parent=0 // pred_check
    _
  $region19: #{unet_conv_block.3} parent=0 // pred_check_branch
    %22 = sbr.rel (0) target = $region21
  $region20: #{unet_conv_block.3} parent=0 // pred_region
    _
  $region21: #{unet_conv_block.3} parent=0 // pred_fallthru
    _
  // Predicated region
  $region22: #{unet_conv_block.3} parent=0 // pred_check
    _
  $region23: #{unet_conv_block.3} parent=0 // pred_check_branch
    %24 = sbr.rel (0) target = $region25
  $region24: #{unet_conv_block.3} parent=0 // pred_region
    _
  $region25: #{unet_conv_block.3} parent=0 // pred_fallthru
    _
  %v25 = vld [vmem:[%s1] sm:$0xff]
  %v26 = vld [vmem:[%s1 + $0x8] sm:$0xff]
  %v27 = vld [vmem:[%s2] sm:$0x1]
  %v29 = vlaneseq
  %v30 = vshrl.u32 %v29, 7
  %v31 = vsub.s32 0, %v30
  %v32 = vrot.slane %v27, %v31
  %v34 = vmul.f32 %v25, %v32
  %v35 = vmul.f32 %v26, %v32
  %v36 = vld [vmem:[%s3] sm:$0x1]
  %v38 = vlaneseq
  %v39 = vshrl.u32 %v38, 7
  %v40 = vsub.s32 0, %v39
  %v41 = vrot.slane %v36, %v40
  %v43 = vadd.f32 %v34, %v41
  %v44 = vadd.f32 %v35, %v41
  %v45 = vld [vmem:[%s0] sm:$0xff]
  %v46 = vld [vmem:[%s0 + $0x8] sm:$0xff]
  %v47 = vld [vmem:[%s0 + $0x10] sm:$0xff]
  %v48 = vld [vmem:[%s0 + $0x18] sm:$0xff]
  %vm49 = vcmask 130048
  %v51 = vsel %vm49, %v45, 0
  %v54 = vsel %vm49, %v46, 0
  %v57 = vsel %vm49, %v47, 0
  %v60 = vsel %vm49, %v48, 0
  %62 = vmatprep.subr.mxu0 0.0
  %63 = vmatpush1.msra.mxu0 %v43
  %64 = vmatprep.subr.mxu0 0.0
  %65 = vmatpush1.msra.mxu0 %v44
  %66 = vmatprep.subr.mxu0 0.0
  %67 = vmatpush1.msra.mxu0 0.0
  %68 = vmatprep.subr.mxu0 0.0
  %69 = vmatpush1.msra.mxu0 0.0
  %70 = vmatprep.subr.mxu0 0.0
  %71 = vmatpush1.msra.mxu0 0.0
  %72 = vmatprep.subr.mxu0 0.0
  %73 = vmatpush1.msra.mxu0 0.0
  %74 = vmatprep.subr.mxu0 0.0
  %75 = vmatpush1.msra.mxu0 0.0
  %76 = vmatprep.subr.mxu0 0.0
  %77 = vmatpush1.msra.mxu0 0.0
  %78 = vmatprep.subr.mxu0 0.0
  %79 = vmatpush1.msra.mxu0 0.0
  %80 = vmatprep.subr.mxu0 0.0
  %81 = vmatpush1.msra.mxu0 0.0
  %82 = vmatprep.subr.mxu0 0.0
  %83 = vmatpush1.msra.mxu0 0.0
  %84 = vmatprep.subr.mxu0 0.0
  %85 = vmatpush1.msra.mxu0 0.0
  %86 = vmatprep.subr.mxu0 0.0
  %87 = vmatpush1.msra.mxu0 0.0
  %88 = vmatprep.subr.mxu0 0.0
  %89 = vmatpush1.msra.mxu0 0.0
  %90 = vmatprep.subr.mxu0 0.0
  %91 = vmatpush1.msra.mxu0 0.0
  %92 = vmatprep.subr.mxu0 0.0
  %93 = vmatpush1.msra.mxu0 0.0
  %94 = vmatprep.subr.mxu0 0.0
  %95 = vmatpush1.msra.mxu0 0.0
  %96 = vmatprep.subr.mxu0 0.0
  %97 = vmatpush1.msra.mxu0 0.0
  %98 = vmatprep.subr.mxu0 0.0
  %99 = vmatpush1.msra.mxu0 0.0
  %100 = vmatprep.subr.mxu0 0.0
  %101 = vmatpush1.msra.mxu0 0.0
  %102 = vmatprep.subr.mxu0 0.0
  %103 = vmatpush1.msra.mxu0 0.0
  %104 = vmatprep.subr.mxu0 0.0
  %105 = vmatpush1.msra.mxu0 0.0
  %106 = vmatprep.subr.mxu0 0.0
  %107 = vmatpush1.msra.mxu0 0.0
  %108 = vmatprep.subr.mxu0 0.0
  %109 = vmatpush1.msra.mxu0 0.0
  %110 = vmatprep.subr.mxu0 0.0
  %111 = vmatpush1.msra.mxu0 0.0
  %112 = vmatprep.subr.mxu0 0.0
  %113 = vmatpush1.msra.mxu0 0.0
  %114 = vmatprep.subr.mxu0 0.0
  %115 = vmatpush1.msra.mxu0 0.0
  %116 = vmatprep.subr.mxu0 0.0
  %117 = vmatpush1.msra.mxu0 0.0
  %118 = vmatprep.subr.mxu0 0.0
  %119 = vmatpush1.msra.mxu0 0.0
  %120 = vmatprep.subr.mxu0 0.0
  %121 = vmatpush1.msra.mxu0 0.0
  %122 = vmatprep.subr.mxu0 0.0
  %123 = vmatpush1.msra.mxu0 0.0
  %124 = vmatprep.subr.mxu0 0.0
  %125 = vmatpush1.msra.mxu0 0.0
  %126 = vmatprep.mubr.f32.mxu0 0.0
  %127 = vmatmul.mubr.f32.gmra.mrb[0].mxu0 %v51
  %v128 = vpop.f32.mrb[0].mxu0
  %v129 = vadd.f32 0.0, %v128
  %v130 = vpop.f32.mrb[0].mxu0
  %131 = vmatprep.mubr.f32.mxu0 0.0
  %132 = vmatmul.mubr.f32.gmra.mrb[0].mxu0 %v54
  %v133 = vpop.f32.mrb[0].mxu0
  %v134 = vadd.f32 0.0, %v133
  %v135 = vpop.f32.mrb[0].mxu0
  %136 = vmatprep.mubr.f32.mxu0 0.0
  %137 = vmatmul.mubr.f32.gmra.mrb[0].mxu0 %v57
  %v138 = vpop.f32.mrb[0].mxu0
  %v139 = vadd.f32 0.0, %v138
  %v140 = vpop.f32.mrb[0].mxu0
  %141 = vmatprep.mubr.f32.mxu0 0.0
  %142 = vmatmul.mubr.f32.gmra.mrb[0].mxu0 %v60
  %v143 = vpop.f32.mrb[0].mxu0
  %v144 = vadd.f32 0.0, %v143
  %v145 = vpop.f32.mrb[0].mxu0
  %146 = vdwg.mxu0
  %v147 = vld [vmem:[%s4] sm:$0xff]
  %v148 = vld [vmem:[%s4 + $0x8] sm:$0xff]
  %v149 = vld [vmem:[%s4 + $0x10] sm:$0xff]
  %v150 = vld [vmem:[%s5] sm:$0x1]
  %153 = vrot.lane.b32.xlu0 %v129, 8
  %v154 = vpop.permute.xlu0 %153
  %155 = vrot.lane.b32.xlu0 %v134, 8
  %v156 = vpop.permute.xlu0 %155
  %161 = vrot.lane.b32.xlu0 %v139, 16
  %v162 = vpop.permute.xlu0 %161
  %163 = vrot.lane.b32.xlu0 %v144, 16
  %v164 = vpop.permute.xlu0 %163
  %vm167 = vcmask 64512
  %v168 = vsel %vm167, %v43, %v154
  %v169 = vsel %vm167, %v44, %v156
  %v170 = vsel %vm49, %v168, %v162
  %v171 = vsel %vm49, %v169, %v164
  %v173 = vlaneseq
  %v174 = vshrl.u32 %v173, 7
  %v175 = vsub.s32 0, %v174
  %v176 = vrot.slane %v150, %v175
  %vm178 = vcmask 195584
  %v180 = vsel %vm178, %v170, 0
  %v183 = vsel %vm178, %v171, 0
  %185 = vmatprep.subr.mxu0 0.0
  %186 = vmatpush1.msra.mxu0 %v147
  %187 = vmatprep.subr.mxu0 0.0
  %188 = vmatpush1.msra.mxu0 %v148
  %189 = vmatprep.subr.mxu0 0.0
  %190 = vmatpush1.msra.mxu0 %v149
  %191 = vmatprep.subr.mxu0 0.0
  %192 = vmatpush1.msra.mxu0 0.0
  %193 = vmatprep.subr.mxu0 0.0
  %194 = vmatpush1.msra.mxu0 0.0
  %195 = vmatprep.subr.mxu0 0.0
  %196 = vmatpush1.msra.mxu0 0.0
  %197 = vmatprep.subr.mxu0 0.0
  %198 = vmatpush1.msra.mxu0 0.0
  %199 = vmatprep.subr.mxu0 0.0
  %200 = vmatpush1.msra.mxu0 0.0
  %201 = vmatprep.subr.mxu0 0.0
  %202 = vmatpush1.msra.mxu0 0.0
  %203 = vmatprep.subr.mxu0 0.0
  %204 = vmatpush1.msra.mxu0 0.0
  %205 = vmatprep.subr.mxu0 0.0
  %206 = vmatpush1.msra.mxu0 0.0
  %207 = vmatprep.subr.mxu0 0.0
  %208 = vmatpush1.msra.mxu0 0.0
  %209 = vmatprep.subr.mxu0 0.0
  %210 = vmatpush1.msra.mxu0 0.0
  %211 = vmatprep.subr.mxu0 0.0
  %212 = vmatpush1.msra.mxu0 0.0
  %213 = vmatprep.subr.mxu0 0.0
  %214 = vmatpush1.msra.mxu0 0.0
  %215 = vmatprep.subr.mxu0 0.0
  %216 = vmatpush1.msra.mxu0 0.0
  %217 = vmatprep.subr.mxu0 0.0
  %218 = vmatpush1.msra.mxu0 0.0
  %219 = vmatprep.subr.mxu0 0.0
  %220 = vmatpush1.msra.mxu0 0.0
  %221 = vmatprep.subr.mxu0 0.0
  %222 = vmatpush1.msra.mxu0 0.0
  %223 = vmatprep.subr.mxu0 0.0
  %224 = vmatpush1.msra.mxu0 0.0
  %225 = vmatprep.subr.mxu0 0.0
  %226 = vmatpush1.msra.mxu0 0.0
  %227 = vmatprep.subr.mxu0 0.0
  %228 = vmatpush1.msra.mxu0 0.0
  %229 = vmatprep.subr.mxu0 0.0
  %230 = vmatpush1.msra.mxu0 0.0
  %231 = vmatprep.subr.mxu0 0.0
  %232 = vmatpush1.msra.mxu0 0.0
  %233 = vmatprep.subr.mxu0 0.0
  %234 = vmatpush1.msra.mxu0 0.0
  %235 = vmatprep.subr.mxu0 0.0
  %236 = vmatpush1.msra.mxu0 0.0
  %237 = vmatprep.subr.mxu0 0.0
  %238 = vmatpush1.msra.mxu0 0.0
  %239 = vmatprep.subr.mxu0 0.0
  %240 = vmatpush1.msra.mxu0 0.0
  %241 = vmatprep.subr.mxu0 0.0
  %242 = vmatpush1.msra.mxu0 0.0
  %243 = vmatprep.subr.mxu0 0.0
  %244 = vmatpush1.msra.mxu0 0.0
  %245 = vmatprep.subr.mxu0 0.0
  %246 = vmatpush1.msra.mxu0 0.0
  %247 = vmatprep.subr.mxu0 0.0
  %248 = vmatpush1.msra.mxu0 0.0
  %249 = vmatprep.mubr.f32.mxu0 0.0
  %250 = vmatmul.mubr.f32.gmra.mrb[0].mxu0 %v180
  %v251 = vpop.f32.mrb[0].mxu0
  %v252 = vadd.f32 %v176, %v251
  %v253 = vpop.f32.mrb[0].mxu0
  %254 = vmatprep.mubr.f32.mxu0 0.0
  %255 = vmatmul.mubr.f32.gmra.mrb[0].mxu0 %v183
  %v256 = vpop.f32.mrb[0].mxu0
  %v257 = vadd.f32 %v176, %v256
  %v258 = vpop.f32.mrb[0].mxu0
  %259 = vdwg.mxu0
  %v260 = vmax.f32 %v252, 0.0
  %v261 = vmax.f32 %v257, 0.0
  %264 = vrot.lane.b32.xlu0 %v43, 120
  %v265 = vpop.permute.xlu0 %264
  %266 = vrot.lane.b32.xlu0 %v44, 120
  %v267 = vpop.permute.xlu0 %266
  %270 = vrot.lane.b32.xlu0 %v139, 8
  %v271 = vpop.permute.xlu0 %270
  %272 = vrot.lane.b32.xlu0 %v144, 8
  %v273 = vpop.permute.xlu0 %272
  %v276 = vsel %vm167, %v265, %v129
  %v277 = vsel %vm167, %v267, %v134
  %v278 = vsel %vm49, %v276, %v271
  %v279 = vsel %vm49, %v277, %v273
  %v281 = vsel %vm178, %v278, 0
  %v284 = vsel %vm178, %v279, 0
  %286 = vmatprep.subr.mxu0 0.0
  %287 = vmatpush1.msra.mxu0 %v147
  %288 = vmatprep.subr.mxu0 0.0
  %289 = vmatpush1.msra.mxu0 %v148
  %290 = vmatprep.subr.mxu0 0.0
  %291 = vmatpush1.msra.mxu0 %v149
  %292 = vmatprep.subr.mxu0 0.0
  %293 = vmatpush1.msra.mxu0 0.0
  %294 = vmatprep.subr.mxu0 0.0
  %295 = vmatpush1.msra.mxu0 0.0
  %296 = vmatprep.subr.mxu0 0.0
  %297 = vmatpush1.msra.mxu0 0.0
  %298 = vmatprep.subr.mxu0 0.0
  %299 = vmatpush1.msra.mxu0 0.0
  %300 = vmatprep.subr.mxu0 0.0
  %301 = vmatpush1.msra.mxu0 0.0
  %302 = vmatprep.subr.mxu0 0.0
  %303 = vmatpush1.msra.mxu0 0.0
  %304 = vmatprep.subr.mxu0 0.0
  %305 = vmatpush1.msra.mxu0 0.0
  %306 = vmatprep.subr.mxu0 0.0
  %307 = vmatpush1.msra.mxu0 0.0
  %308 = vmatprep.subr.mxu0 0.0
  %309 = vmatpush1.msra.mxu0 0.0
  %310 = vmatprep.subr.mxu0 0.0
  %311 = vmatpush1.msra.mxu0 0.0
  %312 = vmatprep.subr.mxu0 0.0
  %313 = vmatpush1.msra.mxu0 0.0
  %314 = vmatprep.subr.mxu0 0.0
  %315 = vmatpush1.msra.mxu0 0.0
  %316 = vmatprep.subr.mxu0 0.0
  %317 = vmatpush1.msra.mxu0 0.0
  %318 = vmatprep.subr.mxu0 0.0
  %319 = vmatpush1.msra.mxu0 0.0
  %320 = vmatprep.subr.mxu0 0.0
  %321 = vmatpush1.msra.mxu0 0.0
  %322 = vmatprep.subr.mxu0 0.0
  %323 = vmatpush1.msra.mxu0 0.0
  %324 = vmatprep.subr.mxu0 0.0
  %325 = vmatpush1.msra.mxu0 0.0
  %326 = vmatprep.subr.mxu0 0.0
  %327 = vmatpush1.msra.mxu0 0.0
  %328 = vmatprep.subr.mxu0 0.0
  %329 = vmatpush1.msra.mxu0 0.0
  %330 = vmatprep.subr.mxu0 0.0
  %331 = vmatpush1.msra.mxu0 0.0
  %332 = vmatprep.subr.mxu0 0.0
  %333 = vmatpush1.msra.mxu0 0.0
  %334 = vmatprep.subr.mxu0 0.0
  %335 = vmatpush1.msra.mxu0 0.0
  %336 = vmatprep.subr.mxu0 0.0
  %337 = vmatpush1.msra.mxu0 0.0
  %338 = vmatprep.subr.mxu0 0.0
  %339 = vmatpush1.msra.mxu0 0.0
  %340 = vmatprep.subr.mxu0 0.0
  %341 = vmatpush1.msra.mxu0 0.0
  %342 = vmatprep.subr.mxu0 0.0
  %343 = vmatpush1.msra.mxu0 0.0
  %344 = vmatprep.subr.mxu0 0.0
  %345 = vmatpush1.msra.mxu0 0.0
  %346 = vmatprep.subr.mxu0 0.0
  %347 = vmatpush1.msra.mxu0 0.0
  %348 = vmatprep.subr.mxu0 0.0
  %349 = vmatpush1.msra.mxu0 0.0
  %350 = vmatprep.mubr.f32.mxu0 0.0
  %351 = vmatmul.mubr.f32.gmra.mrb[0].mxu0 %v281
  %v352 = vpop.f32.mrb[0].mxu0
  %v353 = vadd.f32 %v176, %v352
  %v354 = vpop.f32.mrb[0].mxu0
  %355 = vmatprep.mubr.f32.mxu0 0.0
  %356 = vmatmul.mubr.f32.gmra.mrb[0].mxu0 %v284
  %v357 = vpop.f32.mrb[0].mxu0
  %v358 = vadd.f32 %v176, %v357
  %v359 = vpop.f32.mrb[0].mxu0
  %360 = vdwg.mxu0
  %v361 = vmax.f32 %v353, 0.0
  %v362 = vmax.f32 %v358, 0.0
  %365 = vrot.lane.b32.xlu0 %v361, 8
  %v366 = vpop.permute.xlu0 %365
  %367 = vrot.lane.b32.xlu0 %v362, 8
  %v368 = vpop.permute.xlu0 %367
  %v371 = vsel %vm167, %v260, %v366
  %v372 = vsel %vm167, %v261, %v368
  %373 = vst.msk [vmem:[%s6] sm:$0xff] %vm49, %v371
  %374 = vst.msk [vmem:[%s6 + $0x8] sm:$0xff] %vm49, %v372
  %v375 = vsel %vm49, %v371, 0.0
  %v376 = vsel %vm49, %v372, 0.0
  %v377 = vadd.f32 %v375, %v376
  %v378 = vrot.slane %v377, 4
  %v379 = vadd.f32 %v377, %v378
  %v380 = vrot.slane %v379, 2
  %v381 = vadd.f32 %v379, %v380
  %v382 = vrot.slane %v381, 1
  %v383 = vadd.f32 %v381, %v382
  %v384 = vmul.f32 %v371, %v371
  %v385 = vmul.f32 %v372, %v372
  %v386 = vsel %vm49, %v384, 0.0
  %v387 = vsel %vm49, %v385, 0.0
  %v388 = vadd.f32 %v386, %v387
  %v389 = vrot.slane %v388, 4
  %v390 = vadd.f32 %v388, %v389
  %v391 = vrot.slane %v390, 2
  %v392 = vadd.f32 %v390, %v391
  %v393 = vrot.slane %v392, 1
  %v394 = vadd.f32 %v392, %v393
  %vm395 = vcmask 1040384
  %v396 = vsel %vm395, %v383, %v394
  %vm397 = vcmask 123904
  %398 = vst.msk [vmem:[%s7] sm:$0x3] %vm397, %v396
  // Predicated region
  $region26: #{unet_conv_block.3} parent=0 // pred_check
    _
  $region27: #{unet_conv_block.3} parent=0 // pred_check_branch
    %400 = sbr.rel (0) target = $region29
  $region28: #{unet_conv_block.3} parent=0 // pred_region
    _
  $region29: #{unet_conv_block.3} parent=0 // pred_fallthru
    _
  // Predicated region
  $region30: #{unet_conv_block.3} parent=0 // pred_check
    _
  $region31: #{unet_conv_block.3} parent=0 // pred_check_branch
    %402 = sbr.rel (0) target = $region33
  $region32: #{unet_conv_block.3} parent=0 // pred_region
    _
  $region33: #{unet_conv_block.3} parent=0 // pred_fallthru
    _
  // Predicated region
  $region34: #{unet_conv_block.3} parent=0 // pred_check
    _
  $region35: #{unet_conv_block.3} parent=0 // pred_check_branch
    %404 = sbr.rel (0) target = $region37
  $region36: #{unet_conv_block.3} parent=0 // pred_region
    _
  $region37: #{unet_conv_block.3} parent=0 // pred_fallthru
    _
  // Predicated region
  $region38: #{unet_conv_block.3} parent=0 // pred_check
    _
  $region39: #{unet_conv_block.3} parent=0 // pred_check_branch
    %406 = sbr.rel (0) target = $region41
  $region40: #{unet_conv_block.3} parent=0 // pred_region
    _
  $region41: #{unet_conv_block.3} parent=0 // pred_fallthru
    _

</llo_original>
